<compile_context>
chip_gen: v7x
topology: tpu7x:2x2x1
jax: 0.10.0
libtpu: 0.0.40
codegen_flags: <defaults>
</compile_context>

<pallas_src>
import jax
import jax.numpy as jnp
from jax.experimental import pallas as pl
from jax.experimental.pallas import tpu as pltpu


_IGNORE = 255
_CLASS2_WEIGHT = 10.0


def _largest_block(n, limit, multiple_of=1):
    """Largest divisor of n that is <= limit and (multiple_of-aligned or == n).
    Falls back to n (full dim is always layout-legal)."""
    best = 0
    for d in range(1, n + 1):
        if d > limit:
            break
        if n % d == 0 and (d % multiple_of == 0 or d == n):
            best = d
    return best if best > 0 else n


def _make_kernel(has_invalid, needs_pad, hw, tsr, sc):
    """Kernel factory. hw/tsr/sc are trace-time constants baked in."""

    def kernel(*refs):
        if has_invalid:
            pred_ref, gt_ref, inv_ref, out_ref = refs
        else:
            pred_ref, gt_ref, out_ref = refs

        # Logit planes, cast to f32 in-register (no wrapper astype copy).
        x = pred_ref[...].astype(jnp.float32)              # (tb, 3, tsr, sc)
        x0, x1, x2 = x[:, 0:1], x[:, 1:2], x[:, 2:3]        # (tb, 1, tsr, sc)

        # gt threshold in-register: no int target plane round-trip in HBM.
        g = gt_ref[...].astype(jnp.float32)                 # (tb, 2, tsr, sc)
        is1 = g[:, 0:1] > 0.9999
        is2 = g[:, 1:2] > 0.9999                            # later torch assignment wins

        # Numerically-stable 3-class log-softmax; purely elementwise
        # (VPU + EUP only, no cross-lane / cross-sublane work).
        m = jnp.maximum(jnp.maximum(x0, x1), x2)
        lse = jnp.log(jnp.exp(x0 - m) + jnp.exp(x1 - m) + jnp.exp(x2 - m))
        # TODO(synk): on v7x (EUP-bound regime) the 4th exp could be dropped via
        # a log1p(mid,lo) formulation; neutral/negative on v5e/v6e, so skipped.
        x_t = jnp.where(is2, x2, jnp.where(is1, x1, x0))
        nll = lse - (x_t - m)                                # -log p(target)
        w = jnp.where(is2, jnp.float32(_CLASS2_WEIGHT), jnp.float32(1.0))

        mask = None
        if has_invalid:
            # torch: target[invalid_mask.bool()] = 255  (overrides everything)
            mask = inv_ref[...] == 0                         # (tb, 1, tsr, sc)
        if needs_pad:
            rows = (jax.lax.broadcasted_iota(jnp.int32, (tsr, sc), 0)
                    + pl.program_id(1) * tsr)
            cols = jax.lax.broadcasted_iota(jnp.int32, (tsr, sc), 1)
            ib = ((rows * sc + cols) < hw)[None, None]       # (1, 1, tsr, sc)
            mask = ib if mask is None else jnp.logical_and(mask, ib)

        # Ignored pixels never multiply nll (inf/NaN-safe masking).
        if mask is None:
            cn, cd = w * nll, w
        else:
            cn = jnp.where(mask, w * nll, jnp.float32(0.0))
            cd = jnp.where(mask, w, jnp.float32(0.0))

        # Reduce only to one (8,128) vreg per quantity (pure VPU adds along the
        # untiled leading dims), then store an unmasked lane-dense partial.
        cn = jnp.sum(cn.reshape(-1, 8, sc), axis=0)          # (8, 128)
        cd = jnp.sum(cd.reshape(-1, 8, sc), axis=0)          # (8, 128)
        out_ref[:, :, 0:8, :] = cn.reshape(1, 1, 8, sc)
        out_ref[:, :, 8:16, :] = cd.reshape(1, 1, 8, sc)

    return kernel


def segmentation_loss_pallas(gt_segm, pred_segm_raw, invalid_mask, img_shape,
                             loss_weight=1.0,
                             block_budget_bytes=4 * 1024 * 1024):
    """gt_segm: (B, M, obj, H, W) float; pred_segm_raw: (B*M, 3, H, W) any float
    dtype (streamed as-is); invalid_mask: (B, M, H, W) or None; img_shape=(h, w)."""
    img_h, img_w = img_shape
    # TODO(synk): when the [:img_h, :img_w] crop actually trims the arrays it is
    # (like the tail padding below) one XLA copy; fold into the index_map only
    # if profiling shows it matters.
    gt = gt_segm[:, :, :2, :img_h, :img_w]        # only object planes 0/1 are used
    pred = pred_segm_raw[..., :img_h, :img_w]
    has_invalid = invalid_mask is not None
    inv = invalid_mask[..., :img_h, :img_w] if has_invalid else None

    B, M, _, H, W = gt.shape
    N = B * M
    HW = H * W

    # Sublane alignment: bf16 packs 16 rows per vreg tile, f32 packs 8, etc.
    itemsizes = [pred.dtype.itemsize, gt.dtype.itemsize]
    if has_invalid:
        itemsizes.append(inv.dtype.itemsize)
    align = max(8, max(32 // it for it in itemsizes))
    pad_to = 128 * align
    HW_pad = ((HW + pad_to - 1) // pad_to) * pad_to
    needs_pad = HW_pad != HW
    sr, sc = HW_pad // 128, 128                    # always lane-dense layout

    pred = pred.reshape(N, 3, HW)
    gt = gt.reshape(N, 2, HW)
    if has_invalid:
        inv = inv.reshape(N, 1, HW)
    if needs_pad:
        padw = ((0, 0), (0, 0), (0, HW_pad - HW))
        pred = jnp.pad(pred, padw)
        gt = jnp.pad(gt, padw)
        if has_invalid:
            inv = jnp.pad(inv, padw)
    pred = pred.reshape(N, 3, sr, sc)
    gt = gt.reshape(N, 2, sr, sc)
    if has_invalid:
        inv = inv.reshape(N, 1, sr, sc)

    # Block sizing: keep the per-step working set (3 logit + 2 gt + 1 invalid
    # planes), double-buffered, under the scoped-VMEM budget of every chip.
    bytes_per_row = sc * (3 * pred.dtype.itemsize + 2 * gt.dtype.itemsize
                          + (inv.dtype.itemsize if has_invalid else 0))
    row_limit = max(align, block_budget_bytes // bytes_per_row)
    tsr = _largest_block(sr, row_limit, multiple_of=align)
    tb = 1
    if tsr == sr:
        tb = _largest_block(N, max(1, block_budget_bytes // (sr * bytes_per_row)))
    gn, gs = N // tb, sr // tsr

    # v7x megacore: both grid axes are "parallel"; make sure there are >= 2
    # steps so both TensorCores actually get work.
    if gn * gs < 2:
        if N >= 2:
            tb = _largest_block(N, N // 2)
        elif sr // 2 >= align:
            new_tsr = _largest_block(sr, sr // 2, multiple_of=align)
            if new_tsr < sr:
                tsr = new_tsr
        gn, gs = N // tb, sr // tsr

    # Safety: scoped-VMEM defaults are 16/32/32 MiB (v5e/v6e/v7x); only request
    # more when a large budget actually needs it.
    vmem_limit = None
    if 4 * block_budget_bytes > 14 * 1024 * 1024:
        vmem_limit = min(4 * block_budget_bytes + (4 << 20), 48 * 1024 * 1024)

    in_specs = [
        pl.BlockSpec((tb, 3, tsr, sc), lambda i, s: (i, 0, s, 0)),   # logits
        pl.BlockSpec((tb, 2, tsr, sc), lambda i, s: (i, 0, s, 0)),   # gt planes 0/1
    ]
    args = [pred, gt]
    if has_invalid:
        in_specs.append(pl.BlockSpec((tb, 1, tsr, sc), lambda i, s: (i, 0, s, 0)))
        args.append(inv)

    parts = pl.pallas_call(
        _make_kernel(has_invalid, needs_pad, HW, tsr, sc),
        out_shape=jax.ShapeDtypeStruct((gn, gs, 16, sc), jnp.float32),
        grid_spec=pltpu.PrefetchScalarGridSpec(
            num_scalar_prefetch=0,
            grid=(gn, gs),
            in_specs=in_specs,
            out_specs=pl.BlockSpec((1, 1, 16, sc), lambda i, s: (i, s, 0, 0)),
        ),
        compiler_params=pltpu.CompilerParams(
            dimension_semantics=("parallel", "parallel"),
            vmem_limit_bytes=vmem_limit),
    )(*args)

    num = jnp.sum(parts[:, :, 0:8, :])
    den = jnp.sum(parts[:, :, 8:16, :])
    # torch CrossEntropyLoss(weight, 'mean', ignore_index=255):
    #   sum(w_y * nll) / sum(w_y) over non-ignored pixels.
    # NOTE: an all-ignored batch gives den == 0 -> NaN (matches torch).
    return jnp.asarray(loss_weight, jnp.float32) * (num / den)


def segmentation_loss_ref(gt_segm, pred_segm_raw, invalid_mask, img_shape,
                          loss_weight=1.0):
    """Pure-JAX reference mirroring the PyTorch forward."""
    img_h, img_w = img_shape
    gt = gt_segm[..., :img_h, :img_w] > 0.9999
    p = pred_segm_raw[..., :img_h, :img_w].astype(jnp.float32)
    B, M, _, H, W = gt.shape
    target = jnp.zeros((B, M, H, W), jnp.int32)
    target = jnp.where(gt[:, :, 0], 1, target)
    target = jnp.where(gt[:, :, 1], 2, target)
    if invalid_mask is not None:
        inv = invalid_mask[..., :img_h, :img_w].astype(bool)
        target = jnp.where(inv, _IGNORE, target)
    target = target.reshape(B * M, H, W)
    logp = jax.nn.log_softmax(p, axis=1)
    weights = jnp.array([1.0, 1.0, _CLASS2_WEIGHT], jnp.float32)
    valid = target != _IGNORE
    t = jnp.where(valid, target, 0)
    picked = jnp.take_along_axis(logp, t[:, None], axis=1)[:, 0]
    w = weights[t]
    num = jnp.sum(jnp.where(valid, -w * picked, 0.0))
    den = jnp.sum(jnp.where(valid, w, 0.0))
    return jnp.asarray(loss_weight, jnp.float32) * num / den


if __name__ == "__main__":
    key = jax.random.PRNGKey(0)
    k1, k2, k3 = jax.random.split(key, 3)

    B, M, OBJ, H, W = 2, 2, 2, 16, 16

    # gt masks in [0,1]; push some pixels to exactly 1.0 so the >0.9999 test fires.
    u = jax.random.uniform(k1, (B, M, OBJ, H, W), jnp.float32)
    gt_segm = jnp.where(u > 0.7, 1.0, u)
    # raw logits, NCHW with N = B*M, C = 3
    pred_f32 = jax.random.normal(k2, (B * M, 3, H, W), jnp.float32)
    # sparse ignore mask
    invalid_mask = (jax.random.uniform(k3, (B, M, H, W)) > 0.9).astype(jnp.float32)

    checks = [
        # (pred, invalid_mask, img_shape, loss_weight, block_budget_bytes)
        (pred_f32, invalid_mask, (16, 16), 1.0, 4 * 1024 * 1024),
        (pred_f32, invalid_mask, (16, 16), 0.5, 4 * 1024),        # multi-step grid
        (pred_f32, None, (16, 16), 1.0, 4 * 1024 * 1024),          # no ignore mask
        (pred_f32.astype(jnp.bfloat16), invalid_mask, (16, 16), 1.0,
         4 * 1024 * 1024),                                         # bf16 logits as-is
        (pred_f32, invalid_mask, (14, 12), 1.0, 4 * 1024 * 1024),  # crop + ragged HW
    ]
    for pred, inv, shp, lw, budget in checks:
        out = segmentation_loss_pallas(gt_segm, pred, inv, shp,
                                       loss_weight=lw, block_budget_bytes=budget)
        out = jax.block_until_ready(out)
        ref = segmentation_loss_ref(gt_segm, pred, inv, shp, loss_weight=lw)
        assert jnp.allclose(out, ref, rtol=1e-5, atol=1e-5), (shp, lw, out, ref)

    print("KERNEL_OK")
</pallas_src>

<mosaic_0001>
module attributes {stable_mosaic.version = 11 : i64} {
  func.func @kernel(%arg0: i32, %arg1: i32, %arg2: memref<2x3x8x128xf32, #tpu.memory_space<vmem>>, %arg3: memref<2x2x8x128xf32, #tpu.memory_space<vmem>>, %arg4: memref<2x1x8x128xf32, #tpu.memory_space<vmem>>, %arg5: memref<1x1x16x128xf32, #tpu.memory_space<vmem>>) attributes {dimension_semantics = [#tpu.dimension_semantics<parallel>, #tpu.dimension_semantics<parallel>], iteration_bounds = array<i64: 2, 1>, scalar_prefetch = 0 : i64, scratch_operands = 0 : i64, tpu.core_type = #tpu.core_type<tc>, window_params = [{transform_indices = @transform_0, window_bounds = array<i64: 2, 3, 8, 128>}, {transform_indices = @transform_1, window_bounds = array<i64: 2, 2, 8, 128>}, {transform_indices = @transform_2, window_bounds = array<i64: 2, 1, 8, 128>}, {transform_indices = @transform_3, window_bounds = array<i64: 1, 1, 16, 128>}]} {
    %c0 = arith.constant 0 : index
    %c0_0 = arith.constant 0 : index
    %c0_1 = arith.constant 0 : index
    %c0_2 = arith.constant 0 : index
    %0 = vector.load %arg2[%c0, %c0_0, %c0_1, %c0_2] : memref<2x3x8x128xf32, #tpu.memory_space<vmem>>, vector<2x3x8x128xf32>
    %1 = vector.extract_strided_slice %0 {offsets = [0, 0, 0, 0], sizes = [2, 1, 8, 128], strides = [1, 1, 1, 1]} : vector<2x3x8x128xf32> to vector<2x1x8x128xf32>
    %2 = vector.extract_strided_slice %0 {offsets = [0, 1, 0, 0], sizes = [2, 1, 8, 128], strides = [1, 1, 1, 1]} : vector<2x3x8x128xf32> to vector<2x1x8x128xf32>
    %3 = vector.extract_strided_slice %0 {offsets = [0, 2, 0, 0], sizes = [2, 1, 8, 128], strides = [1, 1, 1, 1]} : vector<2x3x8x128xf32> to vector<2x1x8x128xf32>
    %c0_3 = arith.constant 0 : index
    %c0_4 = arith.constant 0 : index
    %c0_5 = arith.constant 0 : index
    %c0_6 = arith.constant 0 : index
    %4 = vector.load %arg3[%c0_3, %c0_4, %c0_5, %c0_6] : memref<2x2x8x128xf32, #tpu.memory_space<vmem>>, vector<2x2x8x128xf32>
    %5 = vector.extract_strided_slice %4 {offsets = [0, 0, 0, 0], sizes = [2, 1, 8, 128], strides = [1, 1, 1, 1]} : vector<2x2x8x128xf32> to vector<2x1x8x128xf32>
    %cst = arith.constant 0.999899983 : f32
    %6 = vector.broadcast %cst : f32 to vector<2x1x8x128xf32>
    %7 = arith.cmpf ogt, %5, %6 : vector<2x1x8x128xf32>
    %8 = vector.extract_strided_slice %4 {offsets = [0, 1, 0, 0], sizes = [2, 1, 8, 128], strides = [1, 1, 1, 1]} : vector<2x2x8x128xf32> to vector<2x1x8x128xf32>
    %cst_7 = arith.constant 0.999899983 : f32
    %9 = vector.broadcast %cst_7 : f32 to vector<2x1x8x128xf32>
    %10 = arith.cmpf ogt, %8, %9 : vector<2x1x8x128xf32>
    %11 = arith.maximumf %1, %2 : vector<2x1x8x128xf32>
    %12 = arith.maximumf %11, %3 : vector<2x1x8x128xf32>
    %13 = arith.subf %1, %12 : vector<2x1x8x128xf32>
    %14 = math.exp %13 : vector<2x1x8x128xf32>
    %15 = arith.subf %2, %12 : vector<2x1x8x128xf32>
    %16 = math.exp %15 : vector<2x1x8x128xf32>
    %17 = arith.addf %14, %16 : vector<2x1x8x128xf32>
    %18 = arith.subf %3, %12 : vector<2x1x8x128xf32>
    %19 = math.exp %18 : vector<2x1x8x128xf32>
    %20 = arith.addf %17, %19 : vector<2x1x8x128xf32>
    %21 = math.log %20 : vector<2x1x8x128xf32>
    %22 = arith.select %7, %2, %1 : vector<2x1x8x128xi1>, vector<2x1x8x128xf32>
    %23 = arith.select %10, %3, %22 : vector<2x1x8x128xi1>, vector<2x1x8x128xf32>
    %24 = arith.subf %23, %12 : vector<2x1x8x128xf32>
    %25 = arith.subf %21, %24 : vector<2x1x8x128xf32>
    %cst_8 = arith.constant 1.000000e+01 : f32
    %cst_9 = arith.constant 1.000000e+00 : f32
    %26 = vector.broadcast %cst_8 : f32 to vector<2x1x8x128xf32>
    %27 = vector.broadcast %cst_9 : f32 to vector<2x1x8x128xf32>
    %28 = arith.select %10, %26, %27 : vector<2x1x8x128xi1>, vector<2x1x8x128xf32>
    %c0_10 = arith.constant 0 : index
    %c0_11 = arith.constant 0 : index
    %c0_12 = arith.constant 0 : index
    %c0_13 = arith.constant 0 : index
    %29 = vector.load %arg4[%c0_10, %c0_11, %c0_12, %c0_13] : memref<2x1x8x128xf32, #tpu.memory_space<vmem>>, vector<2x1x8x128xf32>
    %cst_14 = arith.constant 0.000000e+00 : f32
    %30 = vector.broadcast %cst_14 : f32 to vector<2x1x8x128xf32>
    %31 = arith.cmpf oeq, %29, %30 : vector<2x1x8x128xf32>
    %32 = tpu.iota {dimensions = array<i32: 0>} : vector<8x128xi32>
    %c8_i32 = arith.constant 8 : i32
    %33 = arith.muli %arg1, %c8_i32 : i32
    %34 = vector.broadcast %33 : i32 to vector<8x128xi32>
    %35 = arith.addi %32, %34 : vector<8x128xi32>
    %36 = tpu.iota {dimensions = array<i32: 1>} : vector<8x128xi32>
    %c128_i32 = arith.constant 128 : i32
    %37 = vector.broadcast %c128_i32 : i32 to vector<8x128xi32>
    %38 = arith.muli %35, %37 : vector<8x128xi32>
    %39 = arith.addi %38, %36 : vector<8x128xi32>
    %c256_i32 = arith.constant 256 : i32
    %40 = vector.broadcast %c256_i32 : i32 to vector<8x128xi32>
    %41 = arith.cmpi slt, %39, %40 : vector<8x128xi32>
    %42 = vector.shape_cast %41 : vector<8x128xi1> to vector<1x1x8x128xi1>
    %43 = vector.broadcast %42 : vector<1x1x8x128xi1> to vector<2x1x8x128xi1>
    %44 = arith.andi %31, %43 : vector<2x1x8x128xi1>
    %45 = arith.mulf %28, %25 : vector<2x1x8x128xf32>
    %cst_15 = arith.constant 0.000000e+00 : f32
    %46 = vector.broadcast %cst_15 : f32 to vector<2x1x8x128xf32>
    %47 = arith.select %44, %45, %46 : vector<2x1x8x128xi1>, vector<2x1x8x128xf32>
    %cst_16 = arith.constant 0.000000e+00 : f32
    %48 = vector.broadcast %cst_16 : f32 to vector<2x1x8x128xf32>
    %49 = arith.select %44, %28, %48 : vector<2x1x8x128xi1>, vector<2x1x8x128xf32>
    %50 = vector.shape_cast %47 : vector<2x1x8x128xf32> to vector<2x8x128xf32>
    %cst_17 = arith.constant dense<0.000000e+00> : vector<8x128xf32>
    %51 = vector.multi_reduction <add>, %50, %cst_17 [0] : vector<2x8x128xf32> to vector<8x128xf32>
    %52 = vector.shape_cast %49 : vector<2x1x8x128xf32> to vector<2x8x128xf32>
    %cst_18 = arith.constant dense<0.000000e+00> : vector<8x128xf32>
    %53 = vector.multi_reduction <add>, %52, %cst_18 [0] : vector<2x8x128xf32> to vector<8x128xf32>
    %54 = vector.shape_cast %51 : vector<8x128xf32> to vector<1x1x8x128xf32>
    %c0_19 = arith.constant 0 : index
    %c0_20 = arith.constant 0 : index
    %c0_21 = arith.constant 0 : index
    %c0_22 = arith.constant 0 : index
    %55 = vector.load %arg5[%c0_19, %c0_20, %c0_21, %c0_22] : memref<1x1x16x128xf32, #tpu.memory_space<vmem>>, vector<1x1x8x128xf32>
    tpu.vector_store %arg5[%c0_19, %c0_20, %c0_21, %c0_22], %54 {strides = array<i32>} : memref<1x1x16x128xf32, #tpu.memory_space<vmem>>, vector<1x1x8x128xf32>,
    %56 = vector.shape_cast %53 : vector<8x128xf32> to vector<1x1x8x128xf32>
    %c0_23 = arith.constant 0 : index
    %c0_24 = arith.constant 0 : index
    %c8 = arith.constant 8 : index
    %c0_25 = arith.constant 0 : index
    %57 = vector.load %arg5[%c0_23, %c0_24, %c8, %c0_25] : memref<1x1x16x128xf32, #tpu.memory_space<vmem>>, vector<1x1x8x128xf32>
    tpu.vector_store %arg5[%c0_23, %c0_24, %c8, %c0_25], %56 {strides = array<i32>} : memref<1x1x16x128xf32, #tpu.memory_space<vmem>>, vector<1x1x8x128xf32>,
    return
  }
  func.func @transform_0(%arg0: i32, %arg1: i32) -> (i32, i32, i32, i32) {
    %c0_i32 = arith.constant 0 : i32
    %c0_i32_0 = arith.constant 0 : i32
    %c0_i32_1 = arith.constant 0 : i32
    return %arg0, %c0_i32, %arg1, %c0_i32_0 : i32, i32, i32, i32
  }
  func.func @transform_1(%arg0: i32, %arg1: i32) -> (i32, i32, i32, i32) {
    %c0_i32 = arith.constant 0 : i32
    %c0_i32_0 = arith.constant 0 : i32
    %c0_i32_1 = arith.constant 0 : i32
    return %arg0, %c0_i32, %arg1, %c0_i32_0 : i32, i32, i32, i32
  }
  func.func @transform_2(%arg0: i32, %arg1: i32) -> (i32, i32, i32, i32) {
    %c0_i32 = arith.constant 0 : i32
    %c0_i32_0 = arith.constant 0 : i32
    %c0_i32_1 = arith.constant 0 : i32
    return %arg0, %c0_i32, %arg1, %c0_i32_0 : i32, i32, i32, i32
  }
  func.func @transform_3(%arg0: i32, %arg1: i32) -> (i32, i32, i32, i32) {
    %c0_i32 = arith.constant 0 : i32
    %c0_i32_0 = arith.constant 0 : i32
    %c0_i32_1 = arith.constant 0 : i32
    return %arg0, %arg1, %c0_i32, %c0_i32_0 : i32, i32, i32, i32
  }
}

</mosaic_0001>

<llo_original>
// kernel: tpu_custom_call.1
$region0: #{tpu_custom_call.1}
  #allocation0 [shape = 'u32[]', space=smem, size = 0x4, offset = 0x4, fixed_abs, tag = 'smem constant byte address 0x4 - core index']
  #allocation1 [shape = 'u32[144,128]{1,0:T(1,128)}', space=vmem, size = 0x12000, scoped, tag = 'internal scratch']
  %s0 = inlined_call_operand.hbm [shape: f32[4,3,8,128], index: 0, kind: input, shape index: {}]
  %s1 = inlined_call_operand.hbm [shape: f32[4,2,8,128], index: 1, kind: input, shape index: {}]
  %s2 = inlined_call_operand.hbm [shape: f32[4,1,8,128], index: 2, kind: input, shape index: {}]
  %s3 = inlined_call_operand.hbm [shape: f32[2,1,16,128], index: 3, kind: output, shape index: {}]
  %s4 = sld [smem:[#allocation0]]
  $region57: #{tpu_custom_call.1} parent=0
    _
  %s6 = ssub.s32 1, %s4
  %s7 = scalar_select 0, %s6, %s4
  $region1: #{tpu_custom_call.1} parent=0
    #allocation2 [shape = 'u8[49152]{0}', space=vmem, size = 0xc000, scoped, tag = 'input window, operand 0']
    #allocation3 [shape = 's32[2]{0}', space=sflag, size = 0x8, scoped, tag = 'scoped memory for tpu_custom_call.1']
    #allocation4 [shape = 's32[2]{0}', space=sflag, size = 0x8, scoped, tag = 'scoped memory for tpu_custom_call.1']
    #allocation5 [shape = 'u8[32768]{0}', space=vmem, size = 0x8000, scoped, tag = 'input window, operand 1']
    #allocation6 [shape = 's32[2]{0}', space=sflag, size = 0x8, scoped, tag = 'scoped memory for tpu_custom_call.1']
    #allocation7 [shape = 'u8[16384]{0}', space=vmem, size = 0x4000, scoped, tag = 'input window, operand 2']
    #allocation8 [shape = 'u8[16384]{0}', space=vmem, size = 0x4000, scoped, tag = 'output window, operand 0']
    %8 = vsyncpa [#allocation3], 0
    %s9 = scalar_lea.sflag [#allocation3], 1
    %10 = vsyncpa %s9, 0
    %11 = vsyncpa [#allocation6], 0
    %s12 = scalar_lea.sflag [#allocation6], 1
    %13 = vsyncpa %s12, 0
    %14 = vsyncpa [#allocation4], 0
    %s15 = scalar_lea.sflag [#allocation4], 1
    %16 = vsyncpa %s15, 0
    loop: start=0, step=1, limit=4
    $region2: #{tpu_custom_call.1} parent=1 // loop_pre_header
      _
    $region3: #{tpu_custom_call.1} parent=1 // loop_header
      %s18 = sphi 0, %s22
      %p19 = scmp.ge.s32.totalorder %s18, 4
      %s25 = sphi 0, %s37
      %s26 = sphi 0, %s33
      %s27 = sphi 0, %s25
      %s28 = sphi 0, %s26
      %s29 = sphi 0, %s27
      %s30 = sphi 0, %s28
      %s42 = sphi 0, %s44
      %s45 = sphi 0, %s42
      %s46 = sphi 0, %s45
      %s62 = sphi 0, %s46
      %s70 = sphi 0, %s72
      %s73 = sphi 0, %s70
      %s74 = sphi 0, %s73
      %s90 = sphi 0, %s74
      %s98 = sphi 0, %s100
      %s101 = sphi 0, %s98
      %s102 = sphi 0, %s101
      %s118 = sphi 0, %s102
      %s126 = sphi 0, %s128
      %s129 = sphi 0, %s126
      %s130 = sphi 0, %s129
      %s146 = sphi 0, %s130
    $region4: #{tpu_custom_call.1} parent=1 // loop_header_branch
      %21 = sbr.rel (%p19) target = $region8
    $region5: #{tpu_custom_call.1} parent=1 // loop_body
      %s23 = ssub.s32 %s18, 1
      %s24 = ssub.s32 %s18, 2
      %s31 = sadd.s32 1, %s26
      %p32 = scmp.ge.s32.totalorder %s31, 1
      %s33 = scalar_select %p32, 0, %s31
      %s34 = sadd.s32 1, %s25
      %s35 = scalar_select %p32, %s34, %s25
      %p36 = scmp.ge.s32.totalorder %s35, 2
      %s37 = scalar_select %p36, 0, %s35
      %s38 = ssub.s32 %s25, %s37
      %s39 = ssub.s32 %s26, %s33
      %s40 = sor.u32 %s38, %s39
      %p41 = scmp.eq.s32.totalorder %s40, 0
      %s43 = sadd.s32 %s42, 1
      %s44 = scalar_select %p41, %s42, %s43
      %p47 = pneg %p41
      %p48 = scmp.eq.s32.totalorder %s18, 1
      %p49 = por %p47, %p48
      %p50 = scmp.ne.s32.totalorder %s42, %s45
      %p51 = scmp.eq.s32.totalorder %s18, 0
      %p52 = por %p50, %p51
      %p53 = scmp.ne.s32.totalorder %s42, %s45
      %p54 = scmp.eq.s32.totalorder %s23, 1
      %p55 = por %p53, %p54
      %p56 = scmp.ne.s32.totalorder %s45, %s46
      %p57 = scmp.eq.s32.totalorder %s23, 0
      %p58 = por %p56, %p57
      %p59 = scmp.ne.s32.totalorder %s45, %s46
      %p60 = scmp.eq.s32.totalorder %s24, 1
      %p61 = por %p59, %p60
      %p63 = scmp.ne.s32.totalorder %s46, %s62
      %p64 = scmp.eq.s32.totalorder %s24, 0
      %p65 = por %p63, %p64
      %s66 = ssub.s32 %s25, %s37
      %s67 = ssub.s32 %s26, %s33
      %s68 = sor.u32 %s66, %s67
      %p69 = scmp.eq.s32.totalorder %s68, 0
      %s71 = sadd.s32 %s70, 1
      %s72 = scalar_select %p69, %s70, %s71
      %p75 = pneg %p69
      %p76 = scmp.eq.s32.totalorder %s18, 1
      %p77 = por %p75, %p76
      %p78 = scmp.ne.s32.totalorder %s70, %s73
      %p79 = scmp.eq.s32.totalorder %s18, 0
      %p80 = por %p78, %p79
      %p81 = scmp.ne.s32.totalorder %s70, %s73
      %p82 = scmp.eq.s32.totalorder %s23, 1
      %p83 = por %p81, %p82
      %p84 = scmp.ne.s32.totalorder %s73, %s74
      %p85 = scmp.eq.s32.totalorder %s23, 0
      %p86 = por %p84, %p85
      %p87 = scmp.ne.s32.totalorder %s73, %s74
      %p88 = scmp.eq.s32.totalorder %s24, 1
      %p89 = por %p87, %p88
      %p91 = scmp.ne.s32.totalorder %s74, %s90
      %p92 = scmp.eq.s32.totalorder %s24, 0
      %p93 = por %p91, %p92
      %s94 = ssub.s32 %s25, %s37
      %s95 = ssub.s32 %s26, %s33
      %s96 = sor.u32 %s94, %s95
      %p97 = scmp.eq.s32.totalorder %s96, 0
      %s99 = sadd.s32 %s98, 1
      %s100 = scalar_select %p97, %s98, %s99
      %p103 = pneg %p97
      %p104 = scmp.eq.s32.totalorder %s18, 1
      %p105 = por %p103, %p104
      %p106 = scmp.ne.s32.totalorder %s98, %s101
      %p107 = scmp.eq.s32.totalorder %s18, 0
      %p108 = por %p106, %p107
      %p109 = scmp.ne.s32.totalorder %s98, %s101
      %p110 = scmp.eq.s32.totalorder %s23, 1
      %p111 = por %p109, %p110
      %p112 = scmp.ne.s32.totalorder %s101, %s102
      %p113 = scmp.eq.s32.totalorder %s23, 0
      %p114 = por %p112, %p113
      %p115 = scmp.ne.s32.totalorder %s101, %s102
      %p116 = scmp.eq.s32.totalorder %s24, 1
      %p117 = por %p115, %p116
      %p119 = scmp.ne.s32.totalorder %s102, %s118
      %p120 = scmp.eq.s32.totalorder %s24, 0
      %p121 = por %p119, %p120
      %s122 = ssub.s32 %s25, %s37
      %s123 = ssub.s32 %s26, %s33
      %s124 = sor.u32 %s122, %s123
      %p125 = scmp.eq.s32.totalorder %s124, 0
      %s127 = sadd.s32 %s126, 1
      %s128 = scalar_select %p125, %s126, %s127
      %p131 = pneg %p125
      %p132 = scmp.eq.s32.totalorder %s18, 1
      %p133 = por %p131, %p132
      %p134 = scmp.ne.s32.totalorder %s126, %s129
      %p135 = scmp.eq.s32.totalorder %s18, 0
      %p136 = por %p134, %p135
      %p137 = scmp.ne.s32.totalorder %s126, %s129
      %p138 = scmp.eq.s32.totalorder %s23, 1
      %p139 = por %p137, %p138
      %p140 = scmp.ne.s32.totalorder %s129, %s130
      %p141 = scmp.eq.s32.totalorder %s23, 0
      %p142 = por %p140, %p141
      %p143 = scmp.ne.s32.totalorder %s129, %s130
      %p144 = scmp.eq.s32.totalorder %s24, 1
      %p145 = por %p143, %p144
      %p147 = scmp.ne.s32.totalorder %s130, %s146
      %p148 = scmp.eq.s32.totalorder %s24, 0
      %p149 = por %p147, %p148
      %p150 = scmp.le.s32.totalorder 1, %s18
      %p151 = scmp.lt.s32.totalorder %s18, 3
      %p152 = pnand %p150, %p151
      %p153 = pneg %p152
      // Predicated region
      $region9: #{tpu_custom_call.1} parent=5 // pred_check
        _
      $region10: #{tpu_custom_call.1} parent=5 // pred_check_branch
        %155 = sbr.rel (%p152) target = $region12
      $region11: #{tpu_custom_call.1} parent=5 // pred_region
        %s156 = ssub.s32 %s18, 1
      $region12: #{tpu_custom_call.1} parent=5 // pred_fallthru
        _
      %p157 = scmp.lt.s32.totalorder %s18, 2
      // Predicated region
      $region13: #{tpu_custom_call.1} parent=5 // pred_check
        %p158 = pneg %p157
      $region14: #{tpu_custom_call.1} parent=5 // pred_check_branch
        %160 = sbr.rel (%p158) target = $region16
      $region15: #{tpu_custom_call.1} parent=5 // pred_region
        // Predicated region
        $region17: #{tpu_custom_call.1} parent=15 // pred_check
          %p161 = pneg %p52
        $region18: #{tpu_custom_call.1} parent=15 // pred_check_branch
          %163 = sbr.rel (%p161) target = $region20
        $region19: #{tpu_custom_call.1} parent=15 // pred_region
          %s164 = sand.u32 %s42, 1
          %s165 = scalar_lea.sflag [#allocation3], %s164
          %s166 = sand.u32 %s42, 1
          %s167 = smul.addr %s166, 48
          %s168 = scalar_lea.vmem [#allocation2], %s167
          %s169 = smul.u32 2, %s25
          %s171 = ssub.s32 768, 768
          %172 = vsyncadd %s165, %s171
          %s173 = smul.addr %s169, 3
          %s174 = sadd.s32 %s26, %s173
          %s175 = smul.addr %s174, 128
          %s176 = scalar_lea.hbm %s0, %s175
          %s177 = sshll.u32 %s168, 4
          %s178 = int_to_ptr.vmem [resolvable:$true] %s177
          %183 = dma.hbm_to_vmem [thread:$0]  %s176, 768, %s178, %s165, 128, 128, 8
        $region20: #{tpu_custom_call.1} parent=15 // pred_fallthru
          _
        // Predicated region
        $region21: #{tpu_custom_call.1} parent=15 // pred_check
          %p184 = pneg %p80
        $region22: #{tpu_custom_call.1} parent=15 // pred_check_branch
          %186 = sbr.rel (%p184) target = $region24
        $region23: #{tpu_custom_call.1} parent=15 // pred_region
          %s187 = sand.u32 %s18, 1
          %s188 = scalar_lea.sflag [#allocation6], %s187
          %s189 = sand.u32 %s70, 1
          %s190 = smul.addr %s189, 32
          %s191 = scalar_lea.vmem [#allocation5], %s190
          %s192 = smul.u32 2, %s25
          %s194 = ssub.s32 512, 512
          %195 = vsyncadd %s188, %s194
          %s196 = smul.addr %s192, 2
          %s197 = sadd.s32 %s26, %s196
          %s198 = smul.addr %s197, 128
          %s199 = scalar_lea.hbm %s1, %s198
          %s200 = sshll.u32 %s191, 4
          %s201 = int_to_ptr.vmem [resolvable:$true] %s200
          %206 = dma.hbm_to_vmem [thread:$0]  %s199, 512, %s201, %s188, 128, 128, 8
        $region24: #{tpu_custom_call.1} parent=15 // pred_fallthru
          _
        // Predicated region
        $region25: #{tpu_custom_call.1} parent=15 // pred_check
          %p207 = pneg %p108
        $region26: #{tpu_custom_call.1} parent=15 // pred_check_branch
          %209 = sbr.rel (%p207) target = $region28
        $region27: #{tpu_custom_call.1} parent=15 // pred_region
          %s210 = sand.u32 %s18, 1
          %s211 = scalar_lea.sflag [#allocation6], %s210
          %s212 = sand.u32 %s98, 1
          %s213 = smul.addr %s212, 16
          %s214 = scalar_lea.vmem [#allocation7], %s213
          %s215 = smul.u32 2, %s25
          %s217 = ssub.s32 256, 256
          %218 = vsyncadd %s211, %s217
          %s219 = sadd.s32 %s26, %s215
          %s220 = smul.addr %s219, 128
          %s221 = scalar_lea.hbm %s2, %s220
          %s222 = sshll.u32 %s214, 4
          %s223 = int_to_ptr.vmem [resolvable:$true] %s222
          %228 = dma.hbm_to_vmem [thread:$0]  %s221, 256, %s223, %s211, 128, 128, 8
        $region28: #{tpu_custom_call.1} parent=15 // pred_fallthru
          _
      $region16: #{tpu_custom_call.1} parent=5 // pred_fallthru
        _
      %p229 = scmp.le.s32.totalorder 1, %s18
      %p230 = scmp.lt.s32.totalorder %s18, 3
      %p231 = pnand %p229, %p230
      %p232 = pneg %p231
      // Predicated region
      $region29: #{tpu_custom_call.1} parent=5 // pred_check
        _
      $region30: #{tpu_custom_call.1} parent=5 // pred_check_branch
        %234 = sbr.rel (%p231) target = $region32
      $region31: #{tpu_custom_call.1} parent=5 // pred_region
        %s235 = ssub.s32 %s18, 1
        %s236 = sand.u32 %s45, 1
        %s237 = scalar_lea.sflag [#allocation3], %s236
        %s238 = sand.u32 %s45, 1
        %s239 = smul.addr %s238, 48
        %s240 = scalar_lea.vmem [#allocation2], %s239
        // Predicated region
        $region33: #{tpu_custom_call.1} parent=31 // pred_check
          %p241 = pneg %p58
        $region34: #{tpu_custom_call.1} parent=31 // pred_check_branch
          %243 = sbr.rel (%p241) target = $region36
        $region35: #{tpu_custom_call.1} parent=31 // pred_region
          %244 = dma.done %s237, 768
        $region36: #{tpu_custom_call.1} parent=31 // pred_fallthru
          _
        %s245 = sand.u32 %s23, 1
        %s246 = scalar_lea.sflag [#allocation6], %s245
        %s247 = sand.u32 %s73, 1
        %s248 = smul.addr %s247, 32
        %s249 = scalar_lea.vmem [#allocation5], %s248
        // Predicated region
        $region37: #{tpu_custom_call.1} parent=31 // pred_check
          %p250 = pneg %p86
        $region38: #{tpu_custom_call.1} parent=31 // pred_check_branch
          %252 = sbr.rel (%p250) target = $region40
        $region39: #{tpu_custom_call.1} parent=31 // pred_region
          %253 = dma.done %s246, 512
        $region40: #{tpu_custom_call.1} parent=31 // pred_fallthru
          _
        %s254 = sand.u32 %s23, 1
        %s255 = scalar_lea.sflag [#allocation6], %s254
        %s256 = sand.u32 %s101, 1
        %s257 = smul.addr %s256, 16
        %s258 = scalar_lea.vmem [#allocation7], %s257
        // Predicated region
        $region41: #{tpu_custom_call.1} parent=31 // pred_check
          %p259 = pneg %p114
        $region42: #{tpu_custom_call.1} parent=31 // pred_check_branch
          %261 = sbr.rel (%p259) target = $region44
        $region43: #{tpu_custom_call.1} parent=31 // pred_region
          %262 = dma.done %s255, 256
        $region44: #{tpu_custom_call.1} parent=31 // pred_fallthru
          _
        %s263 = sand.u32 %s45, 1
        %s264 = scalar_lea.sflag [#allocation3], %s263
        %s265 = sand.u32 %s45, 1
        %s266 = smul.addr %s265, 48
        %s267 = scalar_lea.vmem [#allocation2], %s266
        %p268 = pneg %p58
        %p269 = pneg %p55
        %s270 = sand.u32 %s23, 1
        %s271 = scalar_lea.sflag [#allocation6], %s270
        %s272 = sand.u32 %s73, 1
        %s273 = smul.addr %s272, 32
        %s274 = scalar_lea.vmem [#allocation5], %s273
        %p275 = pneg %p86
        %p276 = pneg %p83
        %s277 = sand.u32 %s23, 1
        %s278 = scalar_lea.sflag [#allocation6], %s277
        %s279 = sand.u32 %s101, 1
        %s280 = smul.addr %s279, 16
        %s281 = scalar_lea.vmem [#allocation7], %s280
        %p282 = pneg %p114
        %p283 = pneg %p111
        %p284 = pneg %p142
        %p285 = pneg %p139
        %s286 = sand.u32 %s129, 1
        %s287 = scalar_lea.sflag [#allocation4], %s286
        %s288 = sand.u32 %s129, 1
        %s289 = smul.addr %s288, 16
        %s290 = scalar_lea.vmem [#allocation8], %s289
        %s291 = smul.u32 2, %s27
        %s292 = smul.u32 2, %s27
        %s293 = smul.u32 2, %s27
        %v294 = vld [vmem:[%s240] sm:$0xff]
        %v295 = vld [vmem:[%s240 + $0x8] sm:$0xff]
        %v296 = vld [vmem:[%s240 + $0x10] sm:$0xff]
        %v297 = vld [vmem:[%s240 + $0x18] sm:$0xff]
        %v298 = vld [vmem:[%s240 + $0x20] sm:$0xff]
        %v299 = vld [vmem:[%s240 + $0x28] sm:$0xff]
        %v300 = vld [vmem:[%s249] sm:$0xff]
        %v301 = vld [vmem:[%s249 + $0x8] sm:$0xff]
        %v302 = vld [vmem:[%s249 + $0x10] sm:$0xff]
        %v303 = vld [vmem:[%s249 + $0x18] sm:$0xff]
        %vm304 = vcmp.gt.f32.partialorder %v300, 0.9999
        %vm305 = vcmp.gt.f32.partialorder %v302, 0.9999
        %vm306 = vcmp.gt.f32.partialorder %v301, 0.9999
        %vm307 = vcmp.gt.f32.partialorder %v303, 0.9999
        %v308 = vmax.f32 %v294, %v295
        %v309 = vmax.f32 %v297, %v298
        %v310 = vmax.f32 %v308, %v296
        %v311 = vmax.f32 %v309, %v299
        %v312 = vsub.f32 %v294, %v310
        %v313 = vsub.f32 %v297, %v311
        %v314 = vmul.f32 %v312, 1.442695
        %v315 = vpow.pop %v314
        %v316 = vmul.f32 %v313, 1.442695
        %v317 = vpow.pop %v316
        %v318 = vsub.f32 %v295, %v310
        %v319 = vsub.f32 %v298, %v311
        %v320 = vmul.f32 %v318, 1.442695
        %v321 = vpow.pop %v320
        %v322 = vmul.f32 %v319, 1.442695
        %v323 = vpow.pop %v322
        %v324 = vadd.f32 %v315, %v321
        %v325 = vadd.f32 %v317, %v323
        %v326 = vsub.f32 %v296, %v310
        %v327 = vsub.f32 %v299, %v311
        %v328 = vmul.f32 %v326, 1.442695
        %v329 = vpow.pop %v328
        %v330 = vmul.f32 %v327, 1.442695
        %v331 = vpow.pop %v330
        %v332 = vadd.f32 %v324, %v329
        %v333 = vadd.f32 %v325, %v331
        %v334 = vlog2.pop %v332
        %v335 = vmul.f32 %v334, 0.6931472
        %v336 = vlog2.pop %v333
        %v337 = vmul.f32 %v336, 0.6931472
        %v338 = vsel %vm304, %v295, %v294
        %v339 = vsel %vm305, %v298, %v297
        %v340 = vsel %vm306, %v296, %v338
        %v341 = vsel %vm307, %v299, %v339
        %v342 = vsub.f32 %v340, %v310
        %v343 = vsub.f32 %v341, %v311
        %v344 = vsub.f32 %v335, %v342
        %v345 = vsub.f32 %v337, %v343
        %v346 = vsel %vm306, 10.0, 1.0
        %v347 = vsel %vm307, 10.0, 1.0
        %v348 = vld [vmem:[%s258] sm:$0xff]
        %v349 = vld [vmem:[%s258 + $0x8] sm:$0xff]
        %vm350 = vcmp.eq.f32.partialorder %v348, 0.0
        %vm351 = vcmp.eq.f32.partialorder %v349, 0.0
        %v352 = vlaneseq
        %v353 = vshrl.u32 %v352, 7
        %s354 = smul.u32 %s28, 8
        %v355 = vstv %s354
        %v356 = vadd.s32 %v353, %v355
        %v357 = vlaneseq
        %v358 = vand.u32 %v357, 127
        %v359 = vmul.u32 %v356, 128
        %v360 = vadd.s32 %v359, %v358
        %vm361 = vcmp.lt.s32.totalorder %v360, 256
        %v362 = vsel %vm361, 1, 0
        %vm363 = vcmp.eq.s32.totalorder %v362, 1
        %vm364 = vmand %vm350, %vm363
        %vm365 = vmand %vm351, %vm363
        %v366 = vmul.f32 %v346, %v344
        %v367 = vmul.f32 %v347, %v345
        %v368 = vsel %vm364, %v366, 0.0
        %v369 = vsel %vm365, %v367, 0.0
        %v370 = vsel %vm364, %v346, 0.0
        %v371 = vsel %vm365, %v347, 0.0
        %v372 = vadd.f32 %v368, %v369
        %v373 = vadd.f32 %v370, %v371
        %374 = vst [vmem:[%s290] sm:$0xff] %v372
        %375 = vst [vmem:[%s290 + $0x8] sm:$0xff] %v373
        %s376 = sand.u32 %s129, 1
        %s377 = scalar_lea.sflag [#allocation4], %s376
        %s378 = sand.u32 %s129, 1
        %s379 = smul.addr %s378, 16
        %s380 = scalar_lea.vmem [#allocation8], %s379
        // Predicated region
        $region45: #{tpu_custom_call.1} parent=31 // pred_check
          %p381 = pneg %p139
        $region46: #{tpu_custom_call.1} parent=31 // pred_check_branch
          %383 = sbr.rel (%p381) target = $region48
        $region47: #{tpu_custom_call.1} parent=31 // pred_region
          %s385 = ssub.s32 256, 256
          %386 = vsyncadd %s377, %s385
          %s387 = smul.addr %s28, 2
          %s388 = smul.addr %s27, 2
          %s389 = sadd.s32 %s387, %s388
          %s390 = smul.addr %s389, 128
          %s391 = scalar_lea.hbm %s3, %s390
          %s392 = sshll.u32 %s380, 4
          %s393 = int_to_ptr.vmem [resolvable:$true] %s392
          %398 = dma.vmem_to_hbm [thread:$0]  %s393, 256, %s391, %s377, 128, 128, 8
        $region48: #{tpu_custom_call.1} parent=31 // pred_fallthru
          _
      $region32: #{tpu_custom_call.1} parent=5 // pred_fallthru
        _
      %p399 = scmp.le.s32.totalorder 2, %s18
      // Predicated region
      $region49: #{tpu_custom_call.1} parent=5 // pred_check
        %p400 = pneg %p399
      $region50: #{tpu_custom_call.1} parent=5 // pred_check_branch
        %402 = sbr.rel (%p400) target = $region52
      $region51: #{tpu_custom_call.1} parent=5 // pred_region
        %s403 = ssub.s32 %s18, 2
        // Predicated region
        $region53: #{tpu_custom_call.1} parent=51 // pred_check
          %p404 = pneg %p145
        $region54: #{tpu_custom_call.1} parent=51 // pred_check_branch
          %406 = sbr.rel (%p404) target = $region56
        $region55: #{tpu_custom_call.1} parent=51 // pred_region
          %s407 = sand.u32 %s130, 1
          %s408 = scalar_lea.sflag [#allocation4], %s407
          %s409 = sand.u32 %s130, 1
          %s410 = smul.addr %s409, 16
          %s411 = scalar_lea.vmem [#allocation8], %s410
          %412 = dma.done %s408, 256
        $region56: #{tpu_custom_call.1} parent=51 // pred_fallthru
          _
      $region52: #{tpu_custom_call.1} parent=5 // pred_fallthru
        _
    $region6: #{tpu_custom_call.1} parent=1 // loop_footer
      %s22 = sadd.s32 1, %s18
    $region7: #{tpu_custom_call.1} parent=1 // loop_footer_branch
      %17 = sbr.rel target = $region3
    $region8: #{tpu_custom_call.1} parent=1 // loop_exit
      _
    %413 = vsyncpa [#allocation3], 1
    %s414 = scalar_lea.sflag [#allocation3], 1
    %415 = vsyncpa %s414, 1
    %416 = vsyncpa [#allocation6], 1
    %s417 = scalar_lea.sflag [#allocation6], 1
    %418 = vsyncpa %s417, 1
    %419 = vsyncpa [#allocation4], 1
    %s420 = scalar_lea.sflag [#allocation4], 1
    %421 = vsyncpa %s420, 1

</llo_original>
